<compile_context>
chip_gen: v7x
topology: tpu7x:2x2x1
jax: 0.10.0
libtpu: 0.0.40
codegen_flags: <defaults>
</compile_context>

<pallas_src>
import functools

import jax
import jax.numpy as jnp
from jax.experimental import pallas as pl
from jax.experimental.pallas import tpu as pltpu

_VMEM_LIMIT = 48 * 1024 * 1024   # safe on v5e/v6e (128 MiB) and v7x (64 MiB physical)
_LANE = 128
_SUBLANE = 8


# ----------------------------------------------------------------------------
# small helpers
# ----------------------------------------------------------------------------
def _round_up(v, m):
    return ((v + m - 1) // m) * m


def _pad_axis(a, axis, new_size):
    pads = [(0, 0)] * a.ndim
    pads[axis] = (0, new_size - a.shape[axis])
    return jnp.pad(a, pads)


def _divisor_tile(dim, target, align=1):
    """Largest divisor of `dim` <= target that is a multiple of `align`.
    Falls back to the full dim (always a legal Pallas block size)."""
    if dim <= target:
        return dim
    for d in range(target, 0, -1):
        if dim % d == 0 and d % align == 0:
            return d
    return dim


def _row_tile(h, w, target_rows=128):
    """Largest divisor of `h` such that a row tile covers <= target_rows*w pixels."""
    best = 1
    for d in range(1, h + 1):
        if h % d == 0 and d * w <= target_rows:
            best = d
    return best


# ----------------------------------------------------------------------------
# Pallas kernels
# ----------------------------------------------------------------------------
def matmul_bias_kernel(a_ref, b_ref, bias_ref, o_ref):
    # bf16 MXU inputs (2x MXU throughput + half the VMEM/HBM weight traffic on
    # v6e/v7x), f32 accumulation.
    acc = jnp.dot(a_ref[...].astype(jnp.bfloat16),
                  b_ref[...].astype(jnp.bfloat16),
                  preferred_element_type=jnp.float32)
    o_ref[...] = (acc + bias_ref[...]).astype(o_ref.dtype)


def convnext_block_kernel(xpad_ref, dww_ref, dwb_ref, fmw_ref, fmb_ref,
                          btw_ref, btb_ref, o_ref, *, th, wo):
    """One fused ConvNeXt block row-tile:
       depthwise 7x7 (+folded BN) -> 1x1 expand + GELU -> 1x1 bottleneck + residual.
    The (th*wo, 4C) hidden activation and the dwconv output live entirely in
    VMEM/vregs — they never round-trip through HBM."""
    c = o_ref.shape[3]
    r0 = pl.multiple_of(pl.program_id(1) * th, th)   # top output row of this tile

    # --- spatial mixing: depthwise 7x7 conv + folded BatchNorm ----------------
    # f32 VPU MAC (safe on v5e which has no bf16 VALU); the whole padded image
    # for this batch element is VMEM-resident, so each tap is a cheap re-load.
    acc = jnp.zeros((th, wo, c), jnp.float32)
    for kh in range(7):
        for kw in range(7):
            win = xpad_ref[0, pl.ds(r0 + kh, th), kw:kw + wo, :]
            acc = acc + win * dww_ref[kh, kw]
    mixed = acc + dwb_ref[0]

    # --- feature mixing: 1x1 conv + exact (erf) GELU --------------------------
    # exact erf matches torch.nn.GELU(approximate='none'); tanh-approx would be
    # cheaper (EUP) but changes numerics, so it is intentionally not swapped.
    m2 = mixed.reshape(th * wo, c).astype(jnp.bfloat16)
    hid = jnp.dot(m2, fmw_ref[...], preferred_element_type=jnp.float32) + fmb_ref[...]
    hid = 0.5 * hid * (1.0 + jax.lax.erf(hid * 0.7071067811865476))

    # --- bottleneck 1x1 conv + residual add ------------------------------------
    # TODO(synk): training-mode StochasticDepth (batch-wise random drop) is not
    # implemented; it is the identity in eval mode.
    out = jnp.dot(hid.astype(jnp.bfloat16), btw_ref[...],
                  preferred_element_type=jnp.float32) + btb_ref[...]
    res = xpad_ref[0, pl.ds(r0 + 3, th), 3:3 + wo, :].reshape(th * wo, c)
    o_ref[...] = (out + res).reshape(1, th, wo, c).astype(o_ref.dtype)


def pool_head_kernel(x_ref, w_ref, b_ref, o_ref):
    # global average pool over the flattened spatial axis, then the linear head
    # (the embeddings BatchNorm is already folded into w/b).
    pooled = jnp.mean(x_ref[...], axis=1)
    acc = jnp.dot(pooled, w_ref[...], preferred_element_type=jnp.float32)
    o_ref[...] = (acc + b_ref[...]).astype(o_ref.dtype)


# ----------------------------------------------------------------------------
# Pallas wrappers (tiled grids, pipelined, parallel dimension semantics)
# ----------------------------------------------------------------------------
def matmul_bias(a, b, bias):
    m, k = a.shape
    n = b.shape[1]
    tm = _divisor_tile(m, 256, align=_SUBLANE)
    tn = _divisor_tile(n, 256, align=_LANE)
    cost = pl.CostEstimate(
        flops=2 * m * k * n, transcendentals=0,
        bytes_accessed=m * k * 4 + k * n * 2 + m * n * 4 + n * 4)
    return pl.pallas_call(
        matmul_bias_kernel,
        grid=(m // tm, n // tn),
        in_specs=[pl.BlockSpec((tm, k), lambda i, j: (i, 0)),
                  pl.BlockSpec((k, tn), lambda i, j: (0, j)),
                  pl.BlockSpec((1, tn), lambda i, j: (0, j))],
        out_specs=pl.BlockSpec((tm, tn), lambda i, j: (i, j)),
        out_shape=jax.ShapeDtypeStruct((m, n), jnp.float32),
        compiler_params=pltpu.CompilerParams(
            dimension_semantics=("parallel", "parallel"),
            vmem_limit_bytes=_VMEM_LIMIT),
        cost_estimate=cost,
    )(a, b, bias)


def convnext_block(x, p):
    n, h, w, c = x.shape
    hd = p['fm_w'].shape[1]
    th = _row_tile(h, w)
    # TODO(synk): move the 7x7 zero padding into the kernel (masked halo loads)
    # to save this extra padded-copy HBM round trip per block.
    xpad = jnp.pad(x, ((0, 0), (3, 3), (3, 3), (0, 0)))
    cost = pl.CostEstimate(
        flops=n * h * w * (98 * c + 4 * c * hd),
        transcendentals=n * h * w * hd,
        bytes_accessed=(n * (h + 6) * (w + 6) * c * 4 + n * h * w * c * 4
                        + 50 * c * 4 + 2 * c * hd * 2 + (hd + 2 * c) * 4))
    kernel = functools.partial(convnext_block_kernel, th=th, wo=w)
    return pl.pallas_call(
        kernel,
        grid=(n, h // th),
        in_specs=[
            # full padded image per batch element: its block index ignores the
            # row-tile axis, so it stays VMEM-resident across row tiles and
            # provides the 7x7 halo for free.
            pl.BlockSpec((1, h + 6, w + 6, c), lambda b, i: (b, 0, 0, 0)),
            pl.BlockSpec((7, 7, c), lambda b, i: (0, 0, 0)),
            pl.BlockSpec((1, c), lambda b, i: (0, 0)),
            pl.BlockSpec((c, hd), lambda b, i: (0, 0)),
            pl.BlockSpec((1, hd), lambda b, i: (0, 0)),
            pl.BlockSpec((hd, c), lambda b, i: (0, 0)),
            pl.BlockSpec((1, c), lambda b, i: (0, 0)),
        ],
        out_specs=pl.BlockSpec((1, th, w, c), lambda b, i: (b, i, 0, 0)),
        out_shape=jax.ShapeDtypeStruct((n, h, w, c), jnp.float32),
        compiler_params=pltpu.CompilerParams(
            dimension_semantics=("parallel", "parallel"),
            vmem_limit_bytes=_VMEM_LIMIT),
        cost_estimate=cost,
    )(xpad, p['dw_w'], p['dw_b'], p['fm_w'], p['fm_b'], p['bt_w'], p['bt_b'])


def pool_head(x_nsc, w, b):
    n, s, c = x_nsc.shape
    ncls = w.shape[1]
    tb = n
    if n * s * c * 4 > 4 * 1024 * 1024:
        tb = _divisor_tile(n, max(_SUBLANE, (4 * 1024 * 1024) // (s * c * 4)),
                           align=_SUBLANE)
    return pl.pallas_call(
        pool_head_kernel,
        grid=(n // tb,),
        in_specs=[pl.BlockSpec((tb, s, c), lambda i: (i, 0, 0)),
                  pl.BlockSpec((c, ncls), lambda i: (0, 0)),
                  pl.BlockSpec((1, ncls), lambda i: (0, 0))],
        out_specs=pl.BlockSpec((tb, ncls), lambda i: (i, 0)),
        out_shape=jax.ShapeDtypeStruct((n, ncls), jnp.float32),
        compiler_params=pltpu.CompilerParams(
            dimension_semantics=("parallel",),
            vmem_limit_bytes=_VMEM_LIMIT),
    )(x_nsc, w, b)


# ----------------------------------------------------------------------------
# Glue: patch extraction (im2col for stride-k kxk convs) and parameter setup
# ----------------------------------------------------------------------------
def patchify(x_nhwc, k):
    # TODO(synk): fuse this im2col into the matmul kernel (strided in-kernel
    # loads) to avoid the extra HBM copy of the activation before stem/downsample.
    n, h, w, c = x_nhwc.shape
    x = x_nhwc.reshape(n, h // k, k, w // k, k, c).transpose(0, 1, 3, 2, 4, 5)
    return x.reshape(n * (h // k) * (w // k), k * k * c), (n, h // k, w // k)


def init_params(key, num_classes, in_channels, stage_config):
    eps = 1e-5
    kit = iter(jax.random.split(key, 256))

    def rnd(shape, s=0.1):
        return s * jax.random.normal(next(kit), shape, jnp.float32)

    def bn_fold(c):
        gamma = 1.0 + rnd((c,))
        beta = rnd((c,))
        # eval-mode BN with freshly-initialized running stats (mean=0, var=1)
        return gamma / jnp.sqrt(1.0 + eps), beta

    params = {}
    c0 = stage_config[0][1]       # torch module hardcodes BatchNorm2d(96) in the stem
    c0p = _round_up(c0, _LANE)    # lane-dense channel padding (pad channels stay 0)

    w = rnd((c0, in_channels, 4, 4))
    b = rnd((c0,))
    scale, shift = bn_fold(c0)
    w = w * scale[:, None, None, None]
    b = b * scale + shift
    w = w.transpose(2, 3, 1, 0).reshape(4 * 4 * in_channels, c0)
    params['stem_w'] = _pad_axis(w, 1, c0p).astype(jnp.bfloat16)
    params['stem_b'] = _pad_axis(b.reshape(1, c0), 1, c0p)

    layers = []
    for i, (ratio, c, num_blocks, _dropout) in enumerate(stage_config):
        cp = _round_up(c, _LANE)
        hid = c * ratio
        hidp = _round_up(hid, _LANE)
        for _ in range(num_blocks):
            dw_w = rnd((c, 1, 7, 7))
            dw_b = rnd((c,))
            scale, shift = bn_fold(c)
            dw_w = dw_w * scale[:, None, None, None]
            dw_b = dw_b * scale + shift
            fm_w = rnd((hid, c, 1, 1))[:, :, 0, 0].T        # (c, hid)
            fm_b = rnd((hid,))
            bt_w = rnd((c, hid, 1, 1))[:, :, 0, 0].T        # (hid, c)
            bt_b = rnd((c,))
            layers.append(dict(
                type='block',
                dw_w=_pad_axis(dw_w[:, 0].transpose(1, 2, 0), 2, cp),        # (7,7,cp)
                dw_b=_pad_axis(dw_b.reshape(1, c), 1, cp),
                fm_w=_pad_axis(_pad_axis(fm_w, 0, cp), 1, hidp).astype(jnp.bfloat16),
                fm_b=_pad_axis(fm_b.reshape(1, hid), 1, hidp),
                bt_w=_pad_axis(_pad_axis(bt_w, 0, hidp), 1, cp).astype(jnp.bfloat16),
                bt_b=_pad_axis(bt_b.reshape(1, c), 1, cp),
            ))
        if i < len(stage_config) - 1:
            c_next = stage_config[i + 1][1]
            cnp = _round_up(c_next, _LANE)
            w = rnd((c_next, c, 2, 2))
            b = rnd((c_next,))
            scale, shift = bn_fold(c_next)
            w = w * scale[:, None, None, None]
            b = b * scale + shift
            w = w.transpose(2, 3, 1, 0)             # (2, 2, c, c_next)  (kh, kw, cin)
            w = _pad_axis(w, 2, cp)                 # zero rows for the pad input channels
            w = w.reshape(2 * 2 * cp, c_next)
            layers.append(dict(
                type='down',
                w=_pad_axis(w, 1, cnp).astype(jnp.bfloat16),
                b=_pad_axis(b.reshape(1, c_next), 1, cnp),
            ))
    params['layers'] = layers

    c_last = stage_config[-1][1]
    clp = _round_up(c_last, _LANE)
    scale, shift = bn_fold(c_last)   # embeddings BN folded through pool (linear) + head
    hw = rnd((num_classes, c_last))
    hb = rnd((num_classes,))
    params['head_w'] = _pad_axis((hw * scale[None, :]).T, 0, clp)
    params['head_b'] = (hw @ shift + hb).reshape(1, num_classes)
    return params


# ----------------------------------------------------------------------------
# Forward pass
# ----------------------------------------------------------------------------
def convnext_forward(x_nchw, params):
    x = jnp.transpose(x_nchw, (0, 2, 3, 1)).astype(jnp.float32)  # NCHW -> NHWC

    # stem: 4x4 stride-4 conv (+folded BN) as patchify + tiled matmul kernel
    patches, (n, h, w) = patchify(x, 4)
    x = matmul_bias(patches, params['stem_w'], params['stem_b']).reshape(n, h, w, -1)

    for layer in params['layers']:
        if layer['type'] == 'block':
            x = convnext_block(x, layer)     # fully fused ConvNeXt block kernel
        else:                                # downsample: 2x2 stride-2 conv + BN (folded)
            patches, (n, h, w) = patchify(x, 2)
            x = matmul_bias(patches, layer['w'], layer['b']).reshape(n, h, w, -1)

    # embeddings (BN folded into head) + AdaptiveAvgPool2d(1) + Flatten + Linear
    n, h, w, c = x.shape
    return pool_head(x.reshape(n, h * w, c), params['head_w'], params['head_b'])


if __name__ == "__main__":
    key = jax.random.PRNGKey(0)
    kp, kx = jax.random.split(key)

    num_classes = 10
    in_channels = 3
    # (expansion_ratio, channels, num_blocks, dropout); first stage must be 96
    # channels because the torch module hardcodes BatchNorm2d(96) in the stem.
    stage_config = [(4, 96, 1, 0.1), (4, 192, 1, 0.1)]

    params = init_params(kp, num_classes, in_channels, stage_config)
    # 64x64 input -> 16x16 and 8x8 feature maps: small, but sublane-aligned so
    # the fused block kernel's row tiling (2 row tiles in stage 0) is exercised.
    x = jax.random.normal(kx, (2, in_channels, 64, 64), jnp.float32)

    logits = convnext_forward(x, params)
    jax.block_until_ready(logits)
    assert logits.shape == (2, num_classes)
    assert bool(jnp.all(jnp.isfinite(logits)))
    print("KERNEL_OK")
</pallas_src>

<mosaic_0001>
module attributes {stable_mosaic.version = 11 : i64} {
  func.func @matmul_bias_kernel(%arg0: i32, %arg1: i32, %arg2: memref<256x48xf32, #tpu.memory_space<vmem>>, %arg3: memref<48x128xbf16, #tpu.memory_space<vmem>>, %arg4: memref<1x128xf32, #tpu.memory_space<vmem>>, %arg5: memref<256x128xf32, #tpu.memory_space<vmem>>) attributes {dimension_semantics = [#tpu.dimension_semantics<parallel>, #tpu.dimension_semantics<parallel>], iteration_bounds = array<i64: 2, 1>, scalar_prefetch = 0 : i64, scratch_operands = 0 : i64, tpu.core_type = #tpu.core_type<tc>, window_params = [{transform_indices = @transform_0, window_bounds = array<i64: 256, 48>}, {transform_indices = @transform_1, window_bounds = array<i64: 48, 128>}, {transform_indices = @transform_2, window_bounds = array<i64: 1, 128>}, {transform_indices = @transform_3, window_bounds = array<i64: 256, 128>}]} {
    %c0 = arith.constant 0 : index
    %c0_0 = arith.constant 0 : index
    %0 = vector.load %arg2[%c0, %c0_0] : memref<256x48xf32, #tpu.memory_space<vmem>>, vector<256x48xf32>
    %1 = arith.truncf %0 : vector<256x48xf32> to vector<256x48xbf16>
    %c0_1 = arith.constant 0 : index
    %c0_2 = arith.constant 0 : index
    %2 = vector.load %arg3[%c0_1, %c0_2] : memref<48x128xbf16, #tpu.memory_space<vmem>>, vector<48x128xbf16>
    %cst = arith.constant dense<0.000000e+00> : vector<256x128xf32>
    %3 = tpu.matmul %1, %2, %cst {dimension_numbers = #tpu.dot_dimension_numbers<[1], [0], [0], [1], [0, 0, 1, 1], [], []>} : vector<256x48xbf16>, vector<48x128xbf16>, vector<256x128xf32> -> vector<256x128xf32>
    %c0_3 = arith.constant 0 : index
    %c0_4 = arith.constant 0 : index
    %4 = vector.load %arg4[%c0_3, %c0_4] : memref<1x128xf32, #tpu.memory_space<vmem>>, vector<1x128xf32>
    %5 = vector.broadcast %4 : vector<1x128xf32> to vector<256x128xf32>
    %6 = arith.addf %3, %5 : vector<256x128xf32>
    %c0_5 = arith.constant 0 : index
    %c0_6 = arith.constant 0 : index
    %7 = vector.load %arg5[%c0_5, %c0_6] : memref<256x128xf32, #tpu.memory_space<vmem>>, vector<256x128xf32>
    tpu.vector_store %arg5[%c0_5, %c0_6], %6 {strides = array<i32>} : memref<256x128xf32, #tpu.memory_space<vmem>>, vector<256x128xf32>,
    return
  }
  func.func @transform_0(%arg0: i32, %arg1: i32) -> (i32, i32) {
    %c0_i32 = arith.constant 0 : i32
    %c0_i32_0 = arith.constant 0 : i32
    return %arg0, %c0_i32 : i32, i32
  }
  func.func @transform_1(%arg0: i32, %arg1: i32) -> (i32, i32) {
    %c0_i32 = arith.constant 0 : i32
    %c0_i32_0 = arith.constant 0 : i32
    return %c0_i32, %arg1 : i32, i32
  }
  func.func @transform_2(%arg0: i32, %arg1: i32) -> (i32, i32) {
    %c0_i32 = arith.constant 0 : i32
    %c0_i32_0 = arith.constant 0 : i32
    return %c0_i32, %arg1 : i32, i32
  }
  func.func @transform_3(%arg0: i32, %arg1: i32) -> (i32, i32) {
    %c0_i32 = arith.constant 0 : i32
    return %arg0, %arg1 : i32, i32
  }
}

</mosaic_0001>

<llo_original>
// kernel: tpu_custom_call.1
$region0: #{tpu_custom_call.1}
  #allocation0 [shape = 'u32[]', space=smem, size = 0x4, offset = 0x4, fixed_abs, tag = 'smem constant byte address 0x4 - core index']
  #allocation1 [shape = 'u32[144,128]{1,0:T(1,128)}', space=vmem, size = 0x12000, scoped, tag = 'internal scratch']
  %s0 = inlined_call_operand.vmem [shape: f32[512,48], index: 0, kind: input, shape index: {}]
  %s1 = inlined_call_operand.vmem [shape: bf16[48,128], index: 1, kind: input, shape index: {}]
  %s2 = inlined_call_operand.vmem [shape: f32[1,128], index: 2, kind: input, shape index: {}]
  %s3 = inlined_call_operand.hbm [shape: f32[512,128], index: 3, kind: output, shape index: {}]
  %s4 = sld [smem:[#allocation0]]
  $region45: #{tpu_custom_call.1} parent=0
    _
  %s6 = ssub.s32 1, %s4
  %s7 = scalar_select 0, %s6, %s4
  $region1: #{tpu_custom_call.1} parent=0
    #allocation2 [shape = 'u8[262144]{0}', space=vmem, size = 0x40000, scoped, tag = 'output window, operand 0']
    #allocation3 [shape = 's32[2]{0}', space=sflag, size = 0x8, scoped, tag = 'scoped memory for tpu_custom_call.1']
    %8 = vsyncpa [#allocation3], 0
    %s9 = scalar_lea.sflag [#allocation3], 1
    %10 = vsyncpa %s9, 0
    loop: start=0, step=1, limit=4
    $region2: #{tpu_custom_call.1} parent=1 // loop_pre_header
      _
    $region3: #{tpu_custom_call.1} parent=1 // loop_header
      %s12 = sphi 0, %s16
      %p13 = scmp.ge.s32.totalorder %s12, 4
      %s19 = sphi 0, %s31
      %s20 = sphi 0, %s27
      %s21 = sphi 0, %s19
      %s22 = sphi 0, %s20
      %s23 = sphi 0, %s21
      %s24 = sphi 0, %s22
      %s34 = sphi 0, %s36
      %s37 = sphi 0, %s34
      %s38 = sphi 0, %s37
      %s54 = sphi 0, %s38
      %s60 = sphi 0, %s62
      %s63 = sphi 0, %s60
      %s64 = sphi 0, %s63
      %s80 = sphi 0, %s64
      %s86 = sphi 0, %s88
      %s89 = sphi 0, %s86
      %s90 = sphi 0, %s89
      %s106 = sphi 0, %s90
      %s114 = sphi 0, %s116
      %s117 = sphi 0, %s114
      %s118 = sphi 0, %s117
      %s134 = sphi 0, %s118
    $region4: #{tpu_custom_call.1} parent=1 // loop_header_branch
      %15 = sbr.rel (%p13) target = $region8
    $region5: #{tpu_custom_call.1} parent=1 // loop_body
      %s17 = ssub.s32 %s12, 1
      %s18 = ssub.s32 %s12, 2
      %s25 = sadd.s32 1, %s20
      %p26 = scmp.ge.s32.totalorder %s25, 1
      %s27 = scalar_select %p26, 0, %s25
      %s28 = sadd.s32 1, %s19
      %s29 = scalar_select %p26, %s28, %s19
      %p30 = scmp.ge.s32.totalorder %s29, 2
      %s31 = scalar_select %p30, 0, %s29
      %s32 = ssub.s32 %s19, %s31
      %p33 = scmp.eq.s32.totalorder %s32, 0
      %s35 = sadd.s32 %s34, 1
      %s36 = scalar_select %p33, %s34, %s35
      %p39 = pneg %p33
      %p40 = scmp.eq.s32.totalorder %s12, 1
      %p41 = por %p39, %p40
      %p42 = scmp.ne.s32.totalorder %s34, %s37
      %p43 = scmp.eq.s32.totalorder %s12, 0
      %p44 = por %p42, %p43
      %p45 = scmp.ne.s32.totalorder %s34, %s37
      %p46 = scmp.eq.s32.totalorder %s17, 1
      %p47 = por %p45, %p46
      %p48 = scmp.ne.s32.totalorder %s37, %s38
      %p49 = scmp.eq.s32.totalorder %s17, 0
      %p50 = por %p48, %p49
      %p51 = scmp.ne.s32.totalorder %s37, %s38
      %p52 = scmp.eq.s32.totalorder %s18, 1
      %p53 = por %p51, %p52
      %p55 = scmp.ne.s32.totalorder %s38, %s54
      %p56 = scmp.eq.s32.totalorder %s18, 0
      %p57 = por %p55, %p56
      %s58 = ssub.s32 %s20, %s27
      %p59 = scmp.eq.s32.totalorder %s58, 0
      %s61 = sadd.s32 %s60, 1
      %s62 = scalar_select %p59, %s60, %s61
      %p65 = pneg %p59
      %p66 = scmp.eq.s32.totalorder %s12, 1
      %p67 = por %p65, %p66
      %p68 = scmp.ne.s32.totalorder %s60, %s63
      %p69 = scmp.eq.s32.totalorder %s12, 0
      %p70 = por %p68, %p69
      %p71 = scmp.ne.s32.totalorder %s60, %s63
      %p72 = scmp.eq.s32.totalorder %s17, 1
      %p73 = por %p71, %p72
      %p74 = scmp.ne.s32.totalorder %s63, %s64
      %p75 = scmp.eq.s32.totalorder %s17, 0
      %p76 = por %p74, %p75
      %p77 = scmp.ne.s32.totalorder %s63, %s64
      %p78 = scmp.eq.s32.totalorder %s18, 1
      %p79 = por %p77, %p78
      %p81 = scmp.ne.s32.totalorder %s64, %s80
      %p82 = scmp.eq.s32.totalorder %s18, 0
      %p83 = por %p81, %p82
      %s84 = ssub.s32 %s20, %s27
      %p85 = scmp.eq.s32.totalorder %s84, 0
      %s87 = sadd.s32 %s86, 1
      %s88 = scalar_select %p85, %s86, %s87
      %p91 = pneg %p85
      %p92 = scmp.eq.s32.totalorder %s12, 1
      %p93 = por %p91, %p92
      %p94 = scmp.ne.s32.totalorder %s86, %s89
      %p95 = scmp.eq.s32.totalorder %s12, 0
      %p96 = por %p94, %p95
      %p97 = scmp.ne.s32.totalorder %s86, %s89
      %p98 = scmp.eq.s32.totalorder %s17, 1
      %p99 = por %p97, %p98
      %p100 = scmp.ne.s32.totalorder %s89, %s90
      %p101 = scmp.eq.s32.totalorder %s17, 0
      %p102 = por %p100, %p101
      %p103 = scmp.ne.s32.totalorder %s89, %s90
      %p104 = scmp.eq.s32.totalorder %s18, 1
      %p105 = por %p103, %p104
      %p107 = scmp.ne.s32.totalorder %s90, %s106
      %p108 = scmp.eq.s32.totalorder %s18, 0
      %p109 = por %p107, %p108
      %s110 = ssub.s32 %s19, %s31
      %s111 = ssub.s32 %s20, %s27
      %s112 = sor.u32 %s110, %s111
      %p113 = scmp.eq.s32.totalorder %s112, 0
      %s115 = sadd.s32 %s114, 1
      %s116 = scalar_select %p113, %s114, %s115
      %p119 = pneg %p113
      %p120 = scmp.eq.s32.totalorder %s12, 1
      %p121 = por %p119, %p120
      %p122 = scmp.ne.s32.totalorder %s114, %s117
      %p123 = scmp.eq.s32.totalorder %s12, 0
      %p124 = por %p122, %p123
      %p125 = scmp.ne.s32.totalorder %s114, %s117
      %p126 = scmp.eq.s32.totalorder %s17, 1
      %p127 = por %p125, %p126
      %p128 = scmp.ne.s32.totalorder %s117, %s118
      %p129 = scmp.eq.s32.totalorder %s17, 0
      %p130 = por %p128, %p129
      %p131 = scmp.ne.s32.totalorder %s117, %s118
      %p132 = scmp.eq.s32.totalorder %s18, 1
      %p133 = por %p131, %p132
      %p135 = scmp.ne.s32.totalorder %s118, %s134
      %p136 = scmp.eq.s32.totalorder %s18, 0
      %p137 = por %p135, %p136
      %p138 = scmp.le.s32.totalorder 1, %s12
      %p139 = scmp.lt.s32.totalorder %s12, 3
      %p140 = pnand %p138, %p139
      %p141 = pneg %p140
      // Predicated region
      $region9: #{tpu_custom_call.1} parent=5 // pred_check
        _
      $region10: #{tpu_custom_call.1} parent=5 // pred_check_branch
        %143 = sbr.rel (%p140) target = $region12
      $region11: #{tpu_custom_call.1} parent=5 // pred_region
        %s144 = ssub.s32 %s12, 1
        // Predicated region
        $region13: #{tpu_custom_call.1} parent=11 // pred_check
          %p145 = pneg %p76
        $region14: #{tpu_custom_call.1} parent=11 // pred_check_branch
          %147 = sbr.rel (%p145) target = $region16
        $region15: #{tpu_custom_call.1} parent=11 // pred_region
          %p148 = scmp.lt.s32.totalorder %s22, 0
          %s149 = scalar_select %p148, %s22, 0
          %s150 = smul.addr %s149, 4
          %s151 = scalar_lea.vmem %s1, %s150
        $region16: #{tpu_custom_call.1} parent=11 // pred_fallthru
          _
        // Predicated region
        $region17: #{tpu_custom_call.1} parent=11 // pred_check
          %p152 = pneg %p102
        $region18: #{tpu_custom_call.1} parent=11 // pred_check_branch
          %154 = sbr.rel (%p152) target = $region20
        $region19: #{tpu_custom_call.1} parent=11 // pred_region
          %p155 = scmp.lt.s32.totalorder %s22, 0
          %s156 = scalar_select %p155, %s22, 0
          %s157 = scalar_lea.vmem %s2, %s156
        $region20: #{tpu_custom_call.1} parent=11 // pred_fallthru
          _
      $region12: #{tpu_custom_call.1} parent=5 // pred_fallthru
        _
      %p158 = scmp.lt.s32.totalorder %s12, 2
      // Predicated region
      $region21: #{tpu_custom_call.1} parent=5 // pred_check
        %p159 = pneg %p158
      $region22: #{tpu_custom_call.1} parent=5 // pred_check_branch
        %161 = sbr.rel (%p159) target = $region24
      $region23: #{tpu_custom_call.1} parent=5 // pred_region
        // Predicated region
        $region25: #{tpu_custom_call.1} parent=23 // pred_check
          %p162 = pneg %p44
        $region26: #{tpu_custom_call.1} parent=23 // pred_check_branch
          %164 = sbr.rel (%p162) target = $region28
        $region27: #{tpu_custom_call.1} parent=23 // pred_region
          %s165 = smul.u32 32, %s19
          %p166 = scmp.lt.s32.totalorder %s165, 63
          %s167 = scalar_select %p166, %s165, 63
          %s168 = smul.addr %s167, 8
          %s169 = scalar_lea.vmem %s0, %s168
          %s170 = smul.u32 32, %s19
        $region28: #{tpu_custom_call.1} parent=23 // pred_fallthru
          _
      $region24: #{tpu_custom_call.1} parent=5 // pred_fallthru
        _
      %p171 = scmp.le.s32.totalorder 1, %s12
      %p172 = scmp.lt.s32.totalorder %s12, 3
      %p173 = pnand %p171, %p172
      %p174 = pneg %p173
      // Predicated region
      $region29: #{tpu_custom_call.1} parent=5 // pred_check
        _
      $region30: #{tpu_custom_call.1} parent=5 // pred_check_branch
        %176 = sbr.rel (%p173) target = $region32
      $region31: #{tpu_custom_call.1} parent=5 // pred_region
        %s177 = ssub.s32 %s12, 1
        %s178 = smul.u32 32, %s21
        %p179 = scmp.lt.s32.totalorder %s178, 63
        %s180 = scalar_select %p179, %s178, 63
        %s181 = smul.addr %s180, 8
        %s182 = scalar_lea.vmem %s0, %s181
        %p183 = pneg %p50
        %p184 = pneg %p47
        %p185 = scmp.lt.s32.totalorder %s22, 0
        %s186 = scalar_select %p185, %s22, 0
        %s187 = smul.addr %s186, 4
        %s188 = scalar_lea.vmem %s1, %s187
        %p189 = pneg %p76
        %p190 = pneg %p73
        %p191 = scmp.lt.s32.totalorder %s22, 0
        %s192 = scalar_select %p191, %s22, 0
        %s193 = scalar_lea.vmem %s2, %s192
        %p194 = pneg %p102
        %p195 = pneg %p99
        %p196 = pneg %p130
        %p197 = pneg %p127
        %s198 = sand.u32 %s117, 1
        %s199 = scalar_lea.sflag [#allocation3], %s198
        %s200 = sand.u32 %s117, 1
        %s201 = smul.addr %s200, 256
        %s202 = scalar_lea.vmem [#allocation2], %s201
        %s203 = smul.u32 32, %s21
        %p204 = scmp.lt.s32.totalorder %s203, 63
        %s205 = scalar_select %p204, %s203, 63
        %s206 = smul.addr %s205, 8
        %s207 = scalar_lea.vmem %s0, %s206
        %s208 = smul.u32 32, %s21
        %p209 = scmp.lt.s32.totalorder %s22, 0
        %s210 = scalar_select %p209, %s22, 0
        %s211 = smul.addr %s210, 4
        %s212 = scalar_lea.vmem %s1, %s211
        %p213 = scmp.lt.s32.totalorder %s22, 0
        %s214 = scalar_select %p213, %s22, 0
        %s215 = scalar_lea.vmem %s2, %s214
        %s216 = smul.u32 32, %s21
        %v218 = vld [vmem:[%s207] sm:$0xff]
        %v219 = vld [vmem:[%s207 + $0x8] sm:$0xff]
        %v220 = vld [vmem:[%s207 + $0x10] sm:$0xff]
        %v221 = vld [vmem:[%s207 + $0x18] sm:$0xff]
        %v222 = vld [vmem:[%s207 + $0x20] sm:$0xff]
        %v223 = vld [vmem:[%s207 + $0x28] sm:$0xff]
        %v224 = vld [vmem:[%s207 + $0x30] sm:$0xff]
        %v225 = vld [vmem:[%s207 + $0x38] sm:$0xff]
        %v226 = vld [vmem:[%s207 + $0x40] sm:$0xff]
        %v227 = vld [vmem:[%s207 + $0x48] sm:$0xff]
        %v228 = vld [vmem:[%s207 + $0x50] sm:$0xff]
        %v229 = vld [vmem:[%s207 + $0x58] sm:$0xff]
        %v230 = vld [vmem:[%s207 + $0x60] sm:$0xff]
        %v231 = vld [vmem:[%s207 + $0x68] sm:$0xff]
        %v232 = vld [vmem:[%s207 + $0x70] sm:$0xff]
        %v233 = vld [vmem:[%s207 + $0x78] sm:$0xff]
        %v234 = vld [vmem:[%s207 + $0x80] sm:$0xff]
        %v235 = vld [vmem:[%s207 + $0x88] sm:$0xff]
        %v236 = vld [vmem:[%s207 + $0x90] sm:$0xff]
        %v237 = vld [vmem:[%s207 + $0x98] sm:$0xff]
        %v238 = vld [vmem:[%s207 + $0xa0] sm:$0xff]
        %v239 = vld [vmem:[%s207 + $0xa8] sm:$0xff]
        %v240 = vld [vmem:[%s207 + $0xb0] sm:$0xff]
        %v241 = vld [vmem:[%s207 + $0xb8] sm:$0xff]
        %v242 = vld [vmem:[%s207 + $0xc0] sm:$0xff]
        %v243 = vld [vmem:[%s207 + $0xc8] sm:$0xff]
        %v244 = vld [vmem:[%s207 + $0xd0] sm:$0xff]
        %v245 = vld [vmem:[%s207 + $0xd8] sm:$0xff]
        %v246 = vld [vmem:[%s207 + $0xe0] sm:$0xff]
        %v247 = vld [vmem:[%s207 + $0xe8] sm:$0xff]
        %v248 = vld [vmem:[%s207 + $0xf0] sm:$0xff]
        %v249 = vld [vmem:[%s207 + $0xf8] sm:$0xff]
        %v250 = vpack.c.bf16 %v219, %v218
        %v251 = vpack.c.bf16 %v221, %v220
        %v252 = vpack.c.bf16 %v223, %v222
        %v253 = vpack.c.bf16 %v225, %v224
        %v254 = vpack.c.bf16 %v227, %v226
        %v255 = vpack.c.bf16 %v229, %v228
        %v256 = vpack.c.bf16 %v231, %v230
        %v257 = vpack.c.bf16 %v233, %v232
        %v258 = vpack.c.bf16 %v235, %v234
        %v259 = vpack.c.bf16 %v237, %v236
        %v260 = vpack.c.bf16 %v239, %v238
        %v261 = vpack.c.bf16 %v241, %v240
        %v262 = vpack.c.bf16 %v243, %v242
        %v263 = vpack.c.bf16 %v245, %v244
        %v264 = vpack.c.bf16 %v247, %v246
        %v265 = vpack.c.bf16 %v249, %v248
        %v266 = vld [vmem:[%s212] sm:$0xf]
        %v267 = vld [vmem:[%s212 + $0x4] sm:$0xf]
        %v268 = vld [vmem:[%s212 + $0x8] sm:$0xf]
        %v269 = vld [vmem:[%s212 + $0xc] sm:$0xf]
        %v270 = vld [vmem:[%s212 + $0x10] sm:$0xf]
        %v271 = vld [vmem:[%s212 + $0x14] sm:$0xf]
        %v272 = vld [vmem:[%s215] sm:$0x1]
        %v274 = vlaneseq
        %v275 = vshrl.u32 %v274, 7
        %v276 = vsub.s32 0, %v275
        %v277 = vrot.slane %v272, %v276
        %v285 = vunpack.c.l.b16 %v266
        %v286 = vunpack.c.l.b16 %v267
        %v287 = vunpack.c.l.b16 %v268
        %v288 = vunpack.c.l.b16 %v269
        %v289 = vunpack.c.l.b16 %v270
        %v290 = vunpack.c.l.b16 %v271
        %v291 = vpack.c.b16 %v286, %v285
        %v292 = vpack.c.b16 %v288, %v287
        %v293 = vpack.c.b16 %v290, %v289
        %vm297 = vcmask 392192
        %v299 = vsel %vm297, %v250, 0
        %v302 = vsel %vm297, %v251, 0
        %v305 = vsel %vm297, %v252, 0
        %v308 = vsel %vm297, %v253, 0
        %v311 = vsel %vm297, %v254, 0
        %v314 = vsel %vm297, %v255, 0
        %v317 = vsel %vm297, %v256, 0
        %v320 = vsel %vm297, %v257, 0
        %v323 = vsel %vm297, %v258, 0
        %v326 = vsel %vm297, %v259, 0
        %v329 = vsel %vm297, %v260, 0
        %v332 = vsel %vm297, %v261, 0
        %v335 = vsel %vm297, %v262, 0
        %v338 = vsel %vm297, %v263, 0
        %v341 = vsel %vm297, %v264, 0
        %v344 = vsel %vm297, %v265, 0
        %346 = vmatprep.subr.bf16.mxu0 0
        %347 = vmatpush1.bf16.msra.mxu0 %v291
        %348 = vmatprep.subr.bf16.mxu0 0
        %349 = vmatpush1.bf16.msra.mxu0 %v292
        %350 = vmatprep.subr.bf16.mxu0 0
        %351 = vmatpush1.bf16.msra.mxu0 %v293
        %352 = vmatprep.subr.bf16.mxu0 0
        %353 = vmatpush1.bf16.msra.mxu0 0
        %354 = vmatprep.subr.bf16.mxu0 0
        %355 = vmatpush1.bf16.msra.mxu0 0
        %356 = vmatprep.subr.bf16.mxu0 0
        %357 = vmatpush1.bf16.msra.mxu0 0
        %358 = vmatprep.subr.bf16.mxu0 0
        %359 = vmatpush1.bf16.msra.mxu0 0
        %360 = vmatprep.subr.bf16.mxu0 0
        %361 = vmatpush1.bf16.msra.mxu0 0
        %362 = vmatprep.subr.bf16.mxu0 0
        %363 = vmatpush1.bf16.msra.mxu0 0
        %364 = vmatprep.subr.bf16.mxu0 0
        %365 = vmatpush1.bf16.msra.mxu0 0
        %366 = vmatprep.subr.bf16.mxu0 0
        %367 = vmatpush1.bf16.msra.mxu0 0
        %368 = vmatprep.subr.bf16.mxu0 0
        %369 = vmatpush1.bf16.msra.mxu0 0
        %370 = vmatprep.subr.bf16.mxu0 0
        %371 = vmatpush1.bf16.msra.mxu0 0
        %372 = vmatprep.subr.bf16.mxu0 0
        %373 = vmatpush1.bf16.msra.mxu0 0
        %374 = vmatprep.subr.bf16.mxu0 0
        %375 = vmatpush1.bf16.msra.mxu0 0
        %376 = vmatprep.subr.bf16.mxu0 0
        %377 = vmatpush1.bf16.msra.mxu0 0
        %378 = vmatprep.mubr.bf16.mxu0 0
        %379 = vmatmul.mubr.bf16.gmra.mrb[0].mxu0 %v299
        %v380 = vpop.f32.mrb[0].mxu0
        %v381 = vadd.f32 %v277, %v380
        %v382 = vpop.f32.mrb[0].mxu0
        %v383 = vpop.f32.mrb[0].mxu0
        %v384 = vadd.f32 %v277, %v383
        %v385 = vpop.f32.mrb[0].mxu0
        %386 = vmatprep.mubr.bf16.mxu0 0
        %387 = vmatmul.mubr.bf16.gmra.mrb[0].mxu0 %v302
        %v388 = vpop.f32.mrb[0].mxu0
        %v389 = vadd.f32 %v277, %v388
        %v390 = vpop.f32.mrb[0].mxu0
        %v391 = vpop.f32.mrb[0].mxu0
        %v392 = vadd.f32 %v277, %v391
        %v393 = vpop.f32.mrb[0].mxu0
        %394 = vmatprep.mubr.bf16.mxu0 0
        %395 = vmatmul.mubr.bf16.gmra.mrb[0].mxu0 %v305
        %v396 = vpop.f32.mrb[0].mxu0
        %v397 = vadd.f32 %v277, %v396
        %v398 = vpop.f32.mrb[0].mxu0
        %v399 = vpop.f32.mrb[0].mxu0
        %v400 = vadd.f32 %v277, %v399
        %v401 = vpop.f32.mrb[0].mxu0
        %402 = vmatprep.mubr.bf16.mxu0 0
        %403 = vmatmul.mubr.bf16.gmra.mrb[0].mxu0 %v308
        %v404 = vpop.f32.mrb[0].mxu0
        %v405 = vadd.f32 %v277, %v404
        %v406 = vpop.f32.mrb[0].mxu0
        %v407 = vpop.f32.mrb[0].mxu0
        %v408 = vadd.f32 %v277, %v407
        %v409 = vpop.f32.mrb[0].mxu0
        %410 = vmatprep.mubr.bf16.mxu0 0
        %411 = vmatmul.mubr.bf16.gmra.mrb[0].mxu0 %v311
        %v412 = vpop.f32.mrb[0].mxu0
        %v413 = vadd.f32 %v277, %v412
        %v414 = vpop.f32.mrb[0].mxu0
        %v415 = vpop.f32.mrb[0].mxu0
        %v416 = vadd.f32 %v277, %v415
        %v417 = vpop.f32.mrb[0].mxu0
        %418 = vmatprep.mubr.bf16.mxu0 0
        %419 = vmatmul.mubr.bf16.gmra.mrb[0].mxu0 %v314
        %v420 = vpop.f32.mrb[0].mxu0
        %v421 = vadd.f32 %v277, %v420
        %v422 = vpop.f32.mrb[0].mxu0
        %v423 = vpop.f32.mrb[0].mxu0
        %v424 = vadd.f32 %v277, %v423
        %v425 = vpop.f32.mrb[0].mxu0
        %426 = vmatprep.mubr.bf16.mxu0 0
        %427 = vmatmul.mubr.bf16.gmra.mrb[0].mxu0 %v317
        %v428 = vpop.f32.mrb[0].mxu0
        %v429 = vadd.f32 %v277, %v428
        %v430 = vpop.f32.mrb[0].mxu0
        %v431 = vpop.f32.mrb[0].mxu0
        %v432 = vadd.f32 %v277, %v431
        %v433 = vpop.f32.mrb[0].mxu0
        %434 = vmatprep.mubr.bf16.mxu0 0
        %435 = vmatmul.mubr.bf16.gmra.mrb[0].mxu0 %v320
        %v436 = vpop.f32.mrb[0].mxu0
        %v437 = vadd.f32 %v277, %v436
        %v438 = vpop.f32.mrb[0].mxu0
        %v439 = vpop.f32.mrb[0].mxu0
        %v440 = vadd.f32 %v277, %v439
        %v441 = vpop.f32.mrb[0].mxu0
        %442 = vmatprep.mubr.bf16.mxu0 0
        %443 = vmatmul.mubr.bf16.gmra.mrb[0].mxu0 %v323
        %v444 = vpop.f32.mrb[0].mxu0
        %v445 = vadd.f32 %v277, %v444
        %v446 = vpop.f32.mrb[0].mxu0
        %v447 = vpop.f32.mrb[0].mxu0
        %v448 = vadd.f32 %v277, %v447
        %v449 = vpop.f32.mrb[0].mxu0
        %450 = vmatprep.mubr.bf16.mxu0 0
        %451 = vmatmul.mubr.bf16.gmra.mrb[0].mxu0 %v326
        %v452 = vpop.f32.mrb[0].mxu0
        %v453 = vadd.f32 %v277, %v452
        %v454 = vpop.f32.mrb[0].mxu0
        %v455 = vpop.f32.mrb[0].mxu0
        %v456 = vadd.f32 %v277, %v455
        %v457 = vpop.f32.mrb[0].mxu0
        %458 = vmatprep.mubr.bf16.mxu0 0
        %459 = vmatmul.mubr.bf16.gmra.mrb[0].mxu0 %v329
        %v460 = vpop.f32.mrb[0].mxu0
        %v461 = vadd.f32 %v277, %v460
        %v462 = vpop.f32.mrb[0].mxu0
        %v463 = vpop.f32.mrb[0].mxu0
        %v464 = vadd.f32 %v277, %v463
        %v465 = vpop.f32.mrb[0].mxu0
        %466 = vmatprep.mubr.bf16.mxu0 0
        %467 = vmatmul.mubr.bf16.gmra.mrb[0].mxu0 %v332
        %v468 = vpop.f32.mrb[0].mxu0
        %v469 = vadd.f32 %v277, %v468
        %v470 = vpop.f32.mrb[0].mxu0
        %v471 = vpop.f32.mrb[0].mxu0
        %v472 = vadd.f32 %v277, %v471
        %v473 = vpop.f32.mrb[0].mxu0
        %474 = vmatprep.mubr.bf16.mxu0 0
        %475 = vmatmul.mubr.bf16.gmra.mrb[0].mxu0 %v335
        %v476 = vpop.f32.mrb[0].mxu0
        %v477 = vadd.f32 %v277, %v476
        %v478 = vpop.f32.mrb[0].mxu0
        %v479 = vpop.f32.mrb[0].mxu0
        %v480 = vadd.f32 %v277, %v479
        %v481 = vpop.f32.mrb[0].mxu0
        %482 = vmatprep.mubr.bf16.mxu0 0
        %483 = vmatmul.mubr.bf16.gmra.mrb[0].mxu0 %v338
        %v484 = vpop.f32.mrb[0].mxu0
        %v485 = vadd.f32 %v277, %v484
        %v486 = vpop.f32.mrb[0].mxu0
        %v487 = vpop.f32.mrb[0].mxu0
        %v488 = vadd.f32 %v277, %v487
        %v489 = vpop.f32.mrb[0].mxu0
        %490 = vmatprep.mubr.bf16.mxu0 0
        %491 = vmatmul.mubr.bf16.gmra.mrb[0].mxu0 %v341
        %v492 = vpop.f32.mrb[0].mxu0
        %v493 = vadd.f32 %v277, %v492
        %v494 = vpop.f32.mrb[0].mxu0
        %v495 = vpop.f32.mrb[0].mxu0
        %v496 = vadd.f32 %v277, %v495
        %v497 = vpop.f32.mrb[0].mxu0
        %498 = vmatprep.mubr.bf16.mxu0 0
        %499 = vmatmul.mubr.bf16.gmra.mrb[0].mxu0 %v344
        %v500 = vpop.f32.mrb[0].mxu0
        %v501 = vadd.f32 %v277, %v500
        %v502 = vpop.f32.mrb[0].mxu0
        %v503 = vpop.f32.mrb[0].mxu0
        %v504 = vadd.f32 %v277, %v503
        %v505 = vpop.f32.mrb[0].mxu0
        %506 = vdwg.mxu0
        %507 = vst [vmem:[%s202] sm:$0xff] %v381
        %508 = vst [vmem:[%s202 + $0x8] sm:$0xff] %v384
        %509 = vst [vmem:[%s202 + $0x10] sm:$0xff] %v389
        %510 = vst [vmem:[%s202 + $0x18] sm:$0xff] %v392
        %511 = vst [vmem:[%s202 + $0x20] sm:$0xff] %v397
        %512 = vst [vmem:[%s202 + $0x28] sm:$0xff] %v400
        %513 = vst [vmem:[%s202 + $0x30] sm:$0xff] %v405
        %514 = vst [vmem:[%s202 + $0x38] sm:$0xff] %v408
        %515 = vst [vmem:[%s202 + $0x40] sm:$0xff] %v413
        %516 = vst [vmem:[%s202 + $0x48] sm:$0xff] %v416
        %517 = vst [vmem:[%s202 + $0x50] sm:$0xff] %v421
        %518 = vst [vmem:[%s202 + $0x58] sm:$0xff] %v424
        %519 = vst [vmem:[%s202 + $0x60] sm:$0xff] %v429
        %520 = vst [vmem:[%s202 + $0x68] sm:$0xff] %v432
        %521 = vst [vmem:[%s202 + $0x70] sm:$0xff] %v437
        %522 = vst [vmem:[%s202 + $0x78] sm:$0xff] %v440
        %523 = vst [vmem:[%s202 + $0x80] sm:$0xff] %v445
        %524 = vst [vmem:[%s202 + $0x88] sm:$0xff] %v448
        %525 = vst [vmem:[%s202 + $0x90] sm:$0xff] %v453
        %526 = vst [vmem:[%s202 + $0x98] sm:$0xff] %v456
        %527 = vst [vmem:[%s202 + $0xa0] sm:$0xff] %v461
        %528 = vst [vmem:[%s202 + $0xa8] sm:$0xff] %v464
        %529 = vst [vmem:[%s202 + $0xb0] sm:$0xff] %v469
        %530 = vst [vmem:[%s202 + $0xb8] sm:$0xff] %v472
        %531 = vst [vmem:[%s202 + $0xc0] sm:$0xff] %v477
        %532 = vst [vmem:[%s202 + $0xc8] sm:$0xff] %v480
        %533 = vst [vmem:[%s202 + $0xd0] sm:$0xff] %v485
        %534 = vst [vmem:[%s202 + $0xd8] sm:$0xff] %v488
        %535 = vst [vmem:[%s202 + $0xe0] sm:$0xff] %v493
        %536 = vst [vmem:[%s202 + $0xe8] sm:$0xff] %v496
        %537 = vst [vmem:[%s202 + $0xf0] sm:$0xff] %v501
        %538 = vst [vmem:[%s202 + $0xf8] sm:$0xff] %v504
        %s539 = sand.u32 %s117, 1
        %s540 = scalar_lea.sflag [#allocation3], %s539
        %s541 = sand.u32 %s117, 1
        %s542 = smul.addr %s541, 256
        %s543 = scalar_lea.vmem [#allocation2], %s542
        // Predicated region
        $region33: #{tpu_custom_call.1} parent=31 // pred_check
          %p544 = pneg %p127
        $region34: #{tpu_custom_call.1} parent=31 // pred_check_branch
          %546 = sbr.rel (%p544) target = $region36
        $region35: #{tpu_custom_call.1} parent=31 // pred_region
          %s547 = smul.u32 32, %s21
          %s549 = ssub.s32 4096, 4096
          %550 = vsyncadd %s540, %s549
          %s551 = sadd.s32 %s22, %s547
          %s552 = smul.addr %s551, 128
          %s553 = scalar_lea.hbm %s3, %s552
          %s554 = sshll.u32 %s543, 4
          %s555 = int_to_ptr.vmem [resolvable:$true] %s554
          %560 = dma.vmem_to_hbm [thread:$0]  %s555, 4096, %s553, %s540, 128, 128, 8
        $region36: #{tpu_custom_call.1} parent=31 // pred_fallthru
          _
      $region32: #{tpu_custom_call.1} parent=5 // pred_fallthru
        _
      %p561 = scmp.le.s32.totalorder 2, %s12
      // Predicated region
      $region37: #{tpu_custom_call.1} parent=5 // pred_check
        %p562 = pneg %p561
      $region38: #{tpu_custom_call.1} parent=5 // pred_check_branch
        %564 = sbr.rel (%p562) target = $region40
      $region39: #{tpu_custom_call.1} parent=5 // pred_region
        %s565 = ssub.s32 %s12, 2
        // Predicated region
        $region41: #{tpu_custom_call.1} parent=39 // pred_check
          %p566 = pneg %p133
        $region42: #{tpu_custom_call.1} parent=39 // pred_check_branch
          %568 = sbr.rel (%p566) target = $region44
        $region43: #{tpu_custom_call.1} parent=39 // pred_region
          %s569 = sand.u32 %s118, 1
          %s570 = scalar_lea.sflag [#allocation3], %s569
          %s571 = sand.u32 %s118, 1
          %s572 = smul.addr %s571, 256
          %s573 = scalar_lea.vmem [#allocation2], %s572
          %574 = dma.done %s570, 4096
        $region44: #{tpu_custom_call.1} parent=39 // pred_fallthru
          _
      $region40: #{tpu_custom_call.1} parent=5 // pred_fallthru
        _
    $region6: #{tpu_custom_call.1} parent=1 // loop_footer
      %s16 = sadd.s32 1, %s12
    $region7: #{tpu_custom_call.1} parent=1 // loop_footer_branch
      %11 = sbr.rel target = $region3
    $region8: #{tpu_custom_call.1} parent=1 // loop_exit
      _
    %575 = vsyncpa [#allocation3], 1
    %s576 = scalar_lea.sflag [#allocation3], 1
    %577 = vsyncpa %s576, 1

</llo_original>
